<compile_context>
chip_gen: v6e
topology: v6e:2x2x1
jax: 0.10.0
libtpu: 0.0.40
codegen_flags: <defaults>
</compile_context>

<pallas_src>
import functools

import jax
import jax.numpy as jnp
from jax.experimental import pallas as pl
from jax.experimental.pallas import tpu as pltpu


def _round_up(x, m):
    return (x + m - 1) // m * m


# ----------------------------------------------------------------------------
# Pallas kernel: fused (split-)Linear + ReLU x2 + fused heads
# ----------------------------------------------------------------------------
def _encoder_kernel(x_ref, c_ref, f_ref,
                    w0x_ref, w0c_ref, w0f_ref, b0_ref,
                    w1_ref, b1_ref,
                    wh_ref, bh_ref,
                    out_ref):
    cdt = w1_ref.dtype                     # matmul input dtype (bf16)
    tb = x_ref.shape[0]
    num_labels = w0c_ref.shape[0]

    # ---- layer 0: x@W0x + onehot(c)@W0c + flow@W0f + b0, then ReLU --------
    labels = c_ref[...]                                           # (TB, 1) i32
    lane = jax.lax.broadcasted_iota(jnp.int32, (tb, num_labels), 1)
    onehot = (lane == labels).astype(cdt)                         # (TB, NL)

    h = jnp.dot(x_ref[...], w0x_ref[...], preferred_element_type=jnp.float32)
    h = h + jnp.dot(onehot, w0c_ref[...], preferred_element_type=jnp.float32)
    h = h + jnp.dot(f_ref[...], w0f_ref[...], preferred_element_type=jnp.float32)
    h = jnp.maximum(h + b0_ref[...], 0.0)                         # f32

    # ---- layer 1: Linear + ReLU -------------------------------------------
    h = jnp.dot(h.astype(cdt), w1_ref[...], preferred_element_type=jnp.float32)
    h = jnp.maximum(h + b1_ref[...], 0.0)

    # ---- fused heads: [means | log_vars] (lane-padded to 128) -------------
    out = jnp.dot(h.astype(cdt), wh_ref[...], preferred_element_type=jnp.float32)
    out_ref[...] = (out + bh_ref[...]).astype(out_ref.dtype)


def encoder_pallas(kparams, x, c, scene_flow, latent_size):
    """x: (B, Dx) float, c: (B,) int labels, scene_flow: (B, 3) float."""
    B, Dx = x.shape
    H1p = kparams["w0x"].shape[1]
    H2p = kparams["w1"].shape[1]
    Lp = kparams["wh"].shape[1]
    nl = kparams["w0c"].shape[0]

    # Batch tile: multiple of 8 sublanes, capped at 512 rows (fits VMEM easily
    # even under the v7x 32 MiB scoped / 64 MiB physical cap).
    TB = min(512, _round_up(max(B, 1), 8))
    Bp = _round_up(B, TB)
    pad = Bp - B
    nb = Bp // TB

    x_p = jnp.pad(x, ((0, pad), (0, 0))).astype(jnp.bfloat16)
    c_p = jnp.pad(c.reshape(-1, 1).astype(jnp.int32), ((0, pad), (0, 0)))
    f_p = jnp.pad(scene_flow, ((0, pad), (0, 0))).astype(jnp.bfloat16)

    row = lambda shape: pl.BlockSpec(shape, lambda i: (i, 0))   # batch-tiled
    const = lambda shape: pl.BlockSpec(shape, lambda i: (0, 0))  # VMEM-resident

    grid_spec = pltpu.PrefetchScalarGridSpec(
        num_scalar_prefetch=0,
        grid=(nb,),
        in_specs=[
            row((TB, Dx)),        # x
            row((TB, 1)),         # labels
            row((TB, 3)),         # scene flow
            const((Dx, H1p)),     # w0_x
            const((nl, H1p)),     # w0_c
            const((3, H1p)),      # w0_f
            const((1, H1p)),      # b0
            const((H1p, H2p)),    # w1
            const((1, H2p)),      # b1
            const((H2p, Lp)),     # fused head weight [wm | wv] (lane-padded)
            const((1, Lp)),       # fused head bias
        ],
        out_specs=pl.BlockSpec((TB, Lp), lambda i: (i, 0)),
    )

    flops = 2 * Bp * (Dx * H1p + nl * H1p + 3 * H1p + H1p * H2p + H2p * Lp)
    bytes_accessed = (
        x_p.size * 2 + c_p.size * 4 + f_p.size * 2
        + sum(int(v.size) * v.dtype.itemsize for v in kparams.values())
        + Bp * Lp * 4)

    out = pl.pallas_call(
        _encoder_kernel,
        out_shape=jax.ShapeDtypeStruct((Bp, Lp), jnp.float32),
        grid_spec=grid_spec,
        compiler_params=pltpu.CompilerParams(
            dimension_semantics=("parallel",)),
        cost_estimate=pl.CostEstimate(
            flops=flops, transcendentals=0, bytes_accessed=bytes_accessed),
    )(x_p, c_p, f_p,
      kparams["w0x"], kparams["w0c"], kparams["w0f"], kparams["b0"],
      kparams["w1"], kparams["b1"], kparams["wh"], kparams["bh"])

    means = out[:B, :latent_size]
    log_vars = out[:B, latent_size:2 * latent_size]
    return means, log_vars


# ----------------------------------------------------------------------------
# Parameter init (torch nn.Linear default init), plus padded/bf16 kernel view
# ----------------------------------------------------------------------------
def init_encoder_params(key, layer_sizes, latent_size, conditional,
                        num_labels, have_scene_flow):
    sizes = list(layer_sizes)
    if conditional:
        sizes[0] += num_labels
    if have_scene_flow:
        sizes[0] += 3
    assert len(sizes) == 3, "this script fuses exactly 2 hidden MLP layers"

    def linear(key, fan_in, fan_out):
        kw, kb = jax.random.split(key)
        lim = 1.0 / jnp.sqrt(fan_in)
        w = jax.random.uniform(kw, (fan_in, fan_out), jnp.float32, -lim, lim)
        b = jax.random.uniform(kb, (1, fan_out), jnp.float32, -lim, lim)
        return w, b

    k0, k1, km, kv = jax.random.split(key, 4)
    w0, b0 = linear(k0, sizes[0], sizes[1])
    w1, b1 = linear(k1, sizes[1], sizes[2])
    wm, bm = linear(km, sizes[2], latent_size)
    wv, bv = linear(kv, sizes[2], latent_size)
    return {"w0": w0, "b0": b0, "w1": w1, "b1": b1,
            "wm": wm, "bm": bm, "wv": wv, "bv": bv}


def build_kernel_params(raw, d_x, num_labels, conditional, have_scene_flow,
                        latent_size):
    """Split w0 rows, fuse heads, zero-pad to 128 lanes, cast weights to bf16."""
    H1 = raw["w0"].shape[1]
    H2 = raw["w1"].shape[1]
    H1p = _round_up(H1, 128)
    H2p = _round_up(H2, 128)
    Lp = _round_up(2 * latent_size, 128)

    w0 = raw["w0"]
    off = d_x
    w0x = w0[:d_x]
    if conditional:
        w0c = w0[off:off + num_labels]
        off += num_labels
    else:
        w0c = jnp.zeros((num_labels, H1), jnp.float32)
    if have_scene_flow:
        w0f = w0[off:off + 3]
    else:
        w0f = jnp.zeros((3, H1), jnp.float32)

    wh = jnp.concatenate([raw["wm"], raw["wv"]], axis=1)   # (H2, 2*latent)
    bh = jnp.concatenate([raw["bm"], raw["bv"]], axis=1)   # (1, 2*latent)

    pc = lambda a, n: jnp.pad(a, ((0, 0), (0, n - a.shape[1])))          # pad cols
    prc = lambda a, r, n: jnp.pad(a, ((0, r - a.shape[0]),
                                      (0, n - a.shape[1])))              # pad both

    bf = jnp.bfloat16
    return {
        "w0x": pc(w0x, H1p).astype(bf),
        "w0c": pc(w0c, H1p).astype(bf),
        "w0f": pc(w0f, H1p).astype(bf),
        "b0": pc(raw["b0"], H1p),                    # f32
        "w1": prc(raw["w1"], H1p, H2p).astype(bf),
        "b1": pc(raw["b1"], H2p),                    # f32
        "wh": prc(wh, H2p, Lp).astype(bf),
        "bh": pc(bh, Lp),                            # f32
    }


# ----------------------------------------------------------------------------
# Forward wrappers
# ----------------------------------------------------------------------------
def encoder_forward(kparams, x, c, scene_flow, *, latent_size):
    B = x.shape[0]
    if c is None:
        c = jnp.zeros((B,), jnp.int32)
    if scene_flow is None:
        scene_flow = jnp.zeros((B, 3), jnp.float32)
    return encoder_pallas(kparams, x, c, scene_flow, latent_size)


def encoder_forward_ref(raw, x, c, scene_flow, *, conditional, num_labels,
                        have_scene_flow):
    """Pure-JAX reference mirroring the kernel's bf16 inputs / f32 accumulation."""
    xin = x
    if conditional:
        oh = jax.nn.one_hot(c.reshape(-1), num_labels, dtype=x.dtype)
        xin = jnp.concatenate((xin, oh), axis=-1)
    if have_scene_flow:
        xin = jnp.concatenate((xin, scene_flow), axis=-1)
    bf = jnp.bfloat16
    h = jnp.dot(xin.astype(bf), raw["w0"].astype(bf),
                preferred_element_type=jnp.float32) + raw["b0"]
    h = jnp.maximum(h, 0.0)
    h = jnp.dot(h.astype(bf), raw["w1"].astype(bf),
                preferred_element_type=jnp.float32) + raw["b1"]
    h = jnp.maximum(h, 0.0)
    means = jnp.dot(h.astype(bf), raw["wm"].astype(bf),
                    preferred_element_type=jnp.float32) + raw["bm"]
    log_vars = jnp.dot(h.astype(bf), raw["wv"].astype(bf),
                       preferred_element_type=jnp.float32) + raw["bv"]
    return means, log_vars


# ----------------------------------------------------------------------------
if __name__ == "__main__":
    batch = 8
    layer_sizes = [32, 64, 48]     # (mutated by __init__ for conditional / flow)
    latent_size = 16
    num_labels = 10
    conditional = True
    have_scene_flow = True
    d_x = layer_sizes[0]

    key = jax.random.PRNGKey(0)
    kp, kx, kc, kf = jax.random.split(key, 4)

    raw = init_encoder_params(kp, list(layer_sizes), latent_size,
                              conditional, num_labels, have_scene_flow)
    kparams = build_kernel_params(raw, d_x, num_labels, conditional,
                                  have_scene_flow, latent_size)

    x = jax.random.normal(kx, (batch, d_x), jnp.float32)
    c = jax.random.randint(kc, (batch,), 0, num_labels, jnp.int32)
    scene_flow = jax.random.normal(kf, (batch, 3), jnp.float32)

    fwd = functools.partial(encoder_forward, latent_size=latent_size)
    means, log_vars = jax.block_until_ready(fwd(kparams, x, c, scene_flow))

    means_ref, logv_ref = encoder_forward_ref(
        raw, x, c, scene_flow, conditional=conditional,
        num_labels=num_labels, have_scene_flow=have_scene_flow)

    assert means.shape == (batch, latent_size)
    assert log_vars.shape == (batch, latent_size)
    assert jnp.allclose(means, means_ref, atol=2e-2, rtol=2e-2)
    assert jnp.allclose(log_vars, logv_ref, atol=2e-2, rtol=2e-2)

    print("KERNEL_OK")
</pallas_src>

<mosaic_0001>
module attributes {stable_mosaic.version = 11 : i64} {
  func.func @_encoder_kernel(%arg0: i32, %arg1: memref<8x32xbf16, #tpu.memory_space<vmem>>, %arg2: memref<8x1xi32, #tpu.memory_space<vmem>>, %arg3: memref<8x3xbf16, #tpu.memory_space<vmem>>, %arg4: memref<32x128xbf16, #tpu.memory_space<vmem>>, %arg5: memref<10x128xbf16, #tpu.memory_space<vmem>>, %arg6: memref<3x128xbf16, #tpu.memory_space<vmem>>, %arg7: memref<1x128xf32, #tpu.memory_space<vmem>>, %arg8: memref<128x128xbf16, #tpu.memory_space<vmem>>, %arg9: memref<1x128xf32, #tpu.memory_space<vmem>>, %arg10: memref<128x128xbf16, #tpu.memory_space<vmem>>, %arg11: memref<1x128xf32, #tpu.memory_space<vmem>>, %arg12: memref<8x128xf32, #tpu.memory_space<vmem>>) attributes {dimension_semantics = [#tpu.dimension_semantics<parallel>], iteration_bounds = array<i64: 1>, scalar_prefetch = 0 : i64, scratch_operands = 0 : i64, tpu.core_type = #tpu.core_type<tc>, window_params = [{transform_indices = @transform_0, window_bounds = array<i64: 8, 32>}, {transform_indices = @transform_1, window_bounds = array<i64: 8, 1>}, {transform_indices = @transform_2, window_bounds = array<i64: 8, 3>}, {pipeline_mode = #tpu.pipeline_mode<synchronous>, transform_indices = @transform_3, window_bounds = array<i64: 32, 128>}, {pipeline_mode = #tpu.pipeline_mode<synchronous>, transform_indices = @transform_4, window_bounds = array<i64: 10, 128>}, {pipeline_mode = #tpu.pipeline_mode<synchronous>, transform_indices = @transform_5, window_bounds = array<i64: 3, 128>}, {pipeline_mode = #tpu.pipeline_mode<synchronous>, transform_indices = @transform_6, window_bounds = array<i64: 1, 128>}, {pipeline_mode = #tpu.pipeline_mode<synchronous>, transform_indices = @transform_7, window_bounds = array<i64: 128, 128>}, {pipeline_mode = #tpu.pipeline_mode<synchronous>, transform_indices = @transform_8, window_bounds = array<i64: 1, 128>}, {pipeline_mode = #tpu.pipeline_mode<synchronous>, transform_indices = @transform_9, window_bounds = array<i64: 128, 128>}, {pipeline_mode = #tpu.pipeline_mode<synchronous>, transform_indices = @transform_10, window_bounds = array<i64: 1, 128>}, {transform_indices = @transform_11, window_bounds = array<i64: 8, 128>}]} {
    %c0 = arith.constant 0 : index
    %c0_0 = arith.constant 0 : index
    %0 = vector.load %arg2[%c0, %c0_0] : memref<8x1xi32, #tpu.memory_space<vmem>>, vector<8x1xi32>
    %1 = tpu.iota {dimensions = array<i32: 1>} : vector<8x10xi32>
    %2 = vector.broadcast %0 : vector<8x1xi32> to vector<8x10xi32>
    %3 = arith.cmpi eq, %1, %2 : vector<8x10xi32>
    %4 = arith.extui %3 : vector<8x10xi1> to vector<8x10xi32>
    %5 = arith.sitofp %4 : vector<8x10xi32> to vector<8x10xf32>
    %6 = arith.truncf %5 : vector<8x10xf32> to vector<8x10xbf16>
    %c0_1 = arith.constant 0 : index
    %c0_2 = arith.constant 0 : index
    %7 = vector.load %arg1[%c0_1, %c0_2] : memref<8x32xbf16, #tpu.memory_space<vmem>>, vector<8x32xbf16>
    %c0_3 = arith.constant 0 : index
    %c0_4 = arith.constant 0 : index
    %8 = vector.load %arg4[%c0_3, %c0_4] : memref<32x128xbf16, #tpu.memory_space<vmem>>, vector<32x128xbf16>
    %cst = arith.constant dense<0.000000e+00> : vector<8x128xf32>
    %9 = tpu.matmul %7, %8, %cst {dimension_numbers = #tpu.dot_dimension_numbers<[1], [0], [0], [1], [0, 0, 1, 1], [], []>} : vector<8x32xbf16>, vector<32x128xbf16>, vector<8x128xf32> -> vector<8x128xf32>
    %c0_5 = arith.constant 0 : index
    %c0_6 = arith.constant 0 : index
    %10 = vector.load %arg5[%c0_5, %c0_6] : memref<10x128xbf16, #tpu.memory_space<vmem>>, vector<10x128xbf16>
    %cst_7 = arith.constant dense<0.000000e+00> : vector<8x128xf32>
    %11 = tpu.matmul %6, %10, %cst_7 {dimension_numbers = #tpu.dot_dimension_numbers<[1], [0], [0], [1], [0, 0, 1, 1], [], []>} : vector<8x10xbf16>, vector<10x128xbf16>, vector<8x128xf32> -> vector<8x128xf32>
    %12 = arith.addf %9, %11 : vector<8x128xf32>
    %c0_8 = arith.constant 0 : index
    %c0_9 = arith.constant 0 : index
    %13 = vector.load %arg3[%c0_8, %c0_9] : memref<8x3xbf16, #tpu.memory_space<vmem>>, vector<8x3xbf16>
    %c0_10 = arith.constant 0 : index
    %c0_11 = arith.constant 0 : index
    %14 = vector.load %arg6[%c0_10, %c0_11] : memref<3x128xbf16, #tpu.memory_space<vmem>>, vector<3x128xbf16>
    %cst_12 = arith.constant dense<0.000000e+00> : vector<8x128xf32>
    %15 = tpu.matmul %13, %14, %cst_12 {dimension_numbers = #tpu.dot_dimension_numbers<[1], [0], [0], [1], [0, 0, 1, 1], [], []>} : vector<8x3xbf16>, vector<3x128xbf16>, vector<8x128xf32> -> vector<8x128xf32>
    %16 = arith.addf %12, %15 : vector<8x128xf32>
    %c0_13 = arith.constant 0 : index
    %c0_14 = arith.constant 0 : index
    %17 = vector.load %arg7[%c0_13, %c0_14] : memref<1x128xf32, #tpu.memory_space<vmem>>, vector<1x128xf32>
    %18 = vector.broadcast %17 : vector<1x128xf32> to vector<8x128xf32>
    %19 = arith.addf %16, %18 : vector<8x128xf32>
    %cst_15 = arith.constant 0.000000e+00 : f32
    %20 = vector.broadcast %cst_15 : f32 to vector<8x128xf32>
    %21 = arith.maximumf %19, %20 : vector<8x128xf32>
    %22 = arith.truncf %21 : vector<8x128xf32> to vector<8x128xbf16>
    %c0_16 = arith.constant 0 : index
    %c0_17 = arith.constant 0 : index
    %23 = vector.load %arg8[%c0_16, %c0_17] : memref<128x128xbf16, #tpu.memory_space<vmem>>, vector<128x128xbf16>
    %cst_18 = arith.constant dense<0.000000e+00> : vector<8x128xf32>
    %24 = tpu.matmul %22, %23, %cst_18 {dimension_numbers = #tpu.dot_dimension_numbers<[1], [0], [0], [1], [0, 0, 1, 1], [], []>} : vector<8x128xbf16>, vector<128x128xbf16>, vector<8x128xf32> -> vector<8x128xf32>
    %c0_19 = arith.constant 0 : index
    %c0_20 = arith.constant 0 : index
    %25 = vector.load %arg9[%c0_19, %c0_20] : memref<1x128xf32, #tpu.memory_space<vmem>>, vector<1x128xf32>
    %26 = vector.broadcast %25 : vector<1x128xf32> to vector<8x128xf32>
    %27 = arith.addf %24, %26 : vector<8x128xf32>
    %cst_21 = arith.constant 0.000000e+00 : f32
    %28 = vector.broadcast %cst_21 : f32 to vector<8x128xf32>
    %29 = arith.maximumf %27, %28 : vector<8x128xf32>
    %30 = arith.truncf %29 : vector<8x128xf32> to vector<8x128xbf16>
    %c0_22 = arith.constant 0 : index
    %c0_23 = arith.constant 0 : index
    %31 = vector.load %arg10[%c0_22, %c0_23] : memref<128x128xbf16, #tpu.memory_space<vmem>>, vector<128x128xbf16>
    %cst_24 = arith.constant dense<0.000000e+00> : vector<8x128xf32>
    %32 = tpu.matmul %30, %31, %cst_24 {dimension_numbers = #tpu.dot_dimension_numbers<[1], [0], [0], [1], [0, 0, 1, 1], [], []>} : vector<8x128xbf16>, vector<128x128xbf16>, vector<8x128xf32> -> vector<8x128xf32>
    %c0_25 = arith.constant 0 : index
    %c0_26 = arith.constant 0 : index
    %33 = vector.load %arg11[%c0_25, %c0_26] : memref<1x128xf32, #tpu.memory_space<vmem>>, vector<1x128xf32>
    %34 = vector.broadcast %33 : vector<1x128xf32> to vector<8x128xf32>
    %35 = arith.addf %32, %34 : vector<8x128xf32>
    %c0_27 = arith.constant 0 : index
    %c0_28 = arith.constant 0 : index
    %36 = vector.load %arg12[%c0_27, %c0_28] : memref<8x128xf32, #tpu.memory_space<vmem>>, vector<8x128xf32>
    tpu.vector_store %arg12[%c0_27, %c0_28], %35 {strides = array<i32>} : memref<8x128xf32, #tpu.memory_space<vmem>>, vector<8x128xf32>,
    return
  }
  func.func @transform_0(%arg0: i32) -> (i32, i32) {
    %c0_i32 = arith.constant 0 : i32
    %c0_i32_0 = arith.constant 0 : i32
    return %arg0, %c0_i32 : i32, i32
  }
  func.func @transform_1(%arg0: i32) -> (i32, i32) {
    %c0_i32 = arith.constant 0 : i32
    %c0_i32_0 = arith.constant 0 : i32
    return %arg0, %c0_i32 : i32, i32
  }
  func.func @transform_2(%arg0: i32) -> (i32, i32) {
    %c0_i32 = arith.constant 0 : i32
    %c0_i32_0 = arith.constant 0 : i32
    return %arg0, %c0_i32 : i32, i32
  }
  func.func @transform_3(%arg0: i32) -> (i32, i32) {
    %c0_i32 = arith.constant 0 : i32
    %c0_i32_0 = arith.constant 0 : i32
    %c0_i32_1 = arith.constant 0 : i32
    return %c0_i32, %c0_i32_0 : i32, i32
  }
  func.func @transform_4(%arg0: i32) -> (i32, i32) {
    %c0_i32 = arith.constant 0 : i32
    %c0_i32_0 = arith.constant 0 : i32
    %c0_i32_1 = arith.constant 0 : i32
    return %c0_i32, %c0_i32_0 : i32, i32
  }
  func.func @transform_5(%arg0: i32) -> (i32, i32) {
    %c0_i32 = arith.constant 0 : i32
    %c0_i32_0 = arith.constant 0 : i32
    %c0_i32_1 = arith.constant 0 : i32
    return %c0_i32, %c0_i32_0 : i32, i32
  }
  func.func @transform_6(%arg0: i32) -> (i32, i32) {
    %c0_i32 = arith.constant 0 : i32
    %c0_i32_0 = arith.constant 0 : i32
    %c0_i32_1 = arith.constant 0 : i32
    return %c0_i32, %c0_i32_0 : i32, i32
  }
  func.func @transform_7(%arg0: i32) -> (i32, i32) {
    %c0_i32 = arith.constant 0 : i32
    %c0_i32_0 = arith.constant 0 : i32
    %c0_i32_1 = arith.constant 0 : i32
    return %c0_i32, %c0_i32_0 : i32, i32
  }
  func.func @transform_8(%arg0: i32) -> (i32, i32) {
    %c0_i32 = arith.constant 0 : i32
    %c0_i32_0 = arith.constant 0 : i32
    %c0_i32_1 = arith.constant 0 : i32
    return %c0_i32, %c0_i32_0 : i32, i32
  }
  func.func @transform_9(%arg0: i32) -> (i32, i32) {
    %c0_i32 = arith.constant 0 : i32
    %c0_i32_0 = arith.constant 0 : i32
    %c0_i32_1 = arith.constant 0 : i32
    return %c0_i32, %c0_i32_0 : i32, i32
  }
  func.func @transform_10(%arg0: i32) -> (i32, i32) {
    %c0_i32 = arith.constant 0 : i32
    %c0_i32_0 = arith.constant 0 : i32
    %c0_i32_1 = arith.constant 0 : i32
    return %c0_i32, %c0_i32_0 : i32, i32
  }
  func.func @transform_11(%arg0: i32) -> (i32, i32) {
    %c0_i32 = arith.constant 0 : i32
    %c0_i32_0 = arith.constant 0 : i32
    return %arg0, %c0_i32 : i32, i32
  }
}

</mosaic_0001>

<llo_original>
// kernel: tpu_custom_call.1
$region0: #{tpu_custom_call.1}
  #allocation0 [shape = 'u32[]', space=smem, size = 0x4, offset = 0x4, fixed_abs, tag = 'smem constant byte address 0x4 - core index']
  #allocation1 [shape = 'u32[144,128]{1,0:T(1,128)}', space=vmem, size = 0x12000, scoped, tag = 'internal scratch']
  %s0 = inlined_call_operand.vmem [shape: bf16[8,32], index: 0, kind: input, shape index: {}]
  %s1 = inlined_call_operand.vmem [shape: s32[8,1], index: 1, kind: input, shape index: {}]
  %s2 = inlined_call_operand.vmem [shape: bf16[8,3], index: 2, kind: input, shape index: {}]
  %s3 = inlined_call_operand.vmem [shape: bf16[32,128], index: 3, kind: input, shape index: {}]
  %s4 = inlined_call_operand.hbm [shape: bf16[10,128], index: 4, kind: input, shape index: {}]
  %s5 = inlined_call_operand.vmem [shape: bf16[3,128], index: 5, kind: input, shape index: {}]
  %s6 = inlined_call_operand.vmem [shape: f32[1,128], index: 6, kind: input, shape index: {}]
  %s7 = inlined_call_operand.hbm [shape: bf16[128,128], index: 7, kind: input, shape index: {}]
  %s8 = inlined_call_operand.vmem [shape: f32[1,128], index: 8, kind: input, shape index: {}]
  %s9 = inlined_call_operand.hbm [shape: bf16[128,128], index: 9, kind: input, shape index: {}]
  %s10 = inlined_call_operand.vmem [shape: f32[1,128], index: 10, kind: input, shape index: {}]
  %s11 = inlined_call_operand.hbm [shape: f32[8,128], index: 11, kind: output, shape index: {}]
  %s12 = sld [smem:[#allocation0]]
  $region66: #{tpu_custom_call.1} parent=0
    _
  %s14 = ssub.s32 1, %s12
  %s15 = scalar_select 0, %s14, %s12
  $region1: #{tpu_custom_call.1} parent=0
    #allocation2 [shape = 'u8[4096]{0}', space=vmem, size = 0x1000, scoped, tag = 'input window, operand 4, single buffered']
    #allocation3 [shape = 's32[1]{0}', space=sflag, size = 0x4, scoped, tag = 'scoped memory for tpu_custom_call.1']
    #allocation4 [shape = 's32[1]{0}', space=sflag, size = 0x4, scoped, tag = 'scoped memory for tpu_custom_call.1']
    #allocation5 [shape = 'u8[32768]{0}', space=vmem, size = 0x8000, scoped, tag = 'input window, operand 7, single buffered']
    #allocation6 [shape = 's32[1]{0}', space=sflag, size = 0x4, scoped, tag = 'scoped memory for tpu_custom_call.1']
    #allocation7 [shape = 'u8[32768]{0}', space=vmem, size = 0x8000, scoped, tag = 'input window, operand 9, single buffered']
    #allocation8 [shape = 'u8[4096]{0}', space=vmem, size = 0x1000, scoped, tag = 'output window, operand 0, single buffered']
    %16 = vsyncpa [#allocation3], 0
    %17 = vsyncpa [#allocation6], 0
    %18 = vsyncpa [#allocation4], 0
    // Predicated region
    $region2: #{tpu_custom_call.1} parent=1 // pred_check
      _
    $region3: #{tpu_custom_call.1} parent=1 // pred_check_branch
      %20 = sbr.rel (0) target = $region5
    $region4: #{tpu_custom_call.1} parent=1 // pred_region
      _
    $region5: #{tpu_custom_call.1} parent=1 // pred_fallthru
      _
    // Predicated region
    $region6: #{tpu_custom_call.1} parent=1 // pred_check
      _
    $region7: #{tpu_custom_call.1} parent=1 // pred_check_branch
      %22 = sbr.rel (0) target = $region9
    $region8: #{tpu_custom_call.1} parent=1 // pred_region
      _
    $region9: #{tpu_custom_call.1} parent=1 // pred_fallthru
      _
    // Predicated region
    $region10: #{tpu_custom_call.1} parent=1 // pred_check
      _
    $region11: #{tpu_custom_call.1} parent=1 // pred_check_branch
      %24 = sbr.rel (0) target = $region13
    $region12: #{tpu_custom_call.1} parent=1 // pred_region
      _
    $region13: #{tpu_custom_call.1} parent=1 // pred_fallthru
      _
    // Predicated region
    $region14: #{tpu_custom_call.1} parent=1 // pred_check
      _
    $region15: #{tpu_custom_call.1} parent=1 // pred_check_branch
      %26 = sbr.rel (0) target = $region17
    $region16: #{tpu_custom_call.1} parent=1 // pred_region
      _
    $region17: #{tpu_custom_call.1} parent=1 // pred_fallthru
      _
    // Predicated region
    $region18: #{tpu_custom_call.1} parent=1 // pred_check
      _
    $region19: #{tpu_custom_call.1} parent=1 // pred_check_branch
      %28 = sbr.rel (0) target = $region21
    $region20: #{tpu_custom_call.1} parent=1 // pred_region
      %s30 = ssub.s32 128, 128
      %31 = vsyncadd [#allocation3], %s30
      %s32 = sshll.u32 [#allocation2], 4
      %s33 = int_to_ptr.vmem [resolvable:$true] %s32
      %38 = dma.hbm_to_vmem [thread:$0]  %s4, 128, %s33, [#allocation3], 64, 64, 4
    $region21: #{tpu_custom_call.1} parent=1 // pred_fallthru
      _
    // Predicated region
    $region22: #{tpu_custom_call.1} parent=1 // pred_check
      _
    $region23: #{tpu_custom_call.1} parent=1 // pred_check_branch
      %40 = sbr.rel (0) target = $region25
    $region24: #{tpu_custom_call.1} parent=1 // pred_region
      _
    $region25: #{tpu_custom_call.1} parent=1 // pred_fallthru
      _
    // Predicated region
    $region26: #{tpu_custom_call.1} parent=1 // pred_check
      _
    $region27: #{tpu_custom_call.1} parent=1 // pred_check_branch
      %42 = sbr.rel (0) target = $region29
    $region28: #{tpu_custom_call.1} parent=1 // pred_region
      _
    $region29: #{tpu_custom_call.1} parent=1 // pred_fallthru
      _
    // Predicated region
    $region30: #{tpu_custom_call.1} parent=1 // pred_check
      _
    $region31: #{tpu_custom_call.1} parent=1 // pred_check_branch
      %44 = sbr.rel (0) target = $region33
    $region32: #{tpu_custom_call.1} parent=1 // pred_region
      %s46 = ssub.s32 1024, 1024
      %47 = vsyncadd [#allocation6], %s46
      %s48 = sshll.u32 [#allocation5], 4
      %s49 = int_to_ptr.vmem [resolvable:$true] %s48
      %54 = dma.hbm_to_vmem [thread:$0]  %s7, 1024, %s49, [#allocation6], 64, 64, 4
    $region33: #{tpu_custom_call.1} parent=1 // pred_fallthru
      _
    // Predicated region
    $region34: #{tpu_custom_call.1} parent=1 // pred_check
      _
    $region35: #{tpu_custom_call.1} parent=1 // pred_check_branch
      %56 = sbr.rel (0) target = $region37
    $region36: #{tpu_custom_call.1} parent=1 // pred_region
      _
    $region37: #{tpu_custom_call.1} parent=1 // pred_fallthru
      _
    // Predicated region
    $region38: #{tpu_custom_call.1} parent=1 // pred_check
      _
    $region39: #{tpu_custom_call.1} parent=1 // pred_check_branch
      %58 = sbr.rel (0) target = $region41
    $region40: #{tpu_custom_call.1} parent=1 // pred_region
      %s60 = ssub.s32 1024, 1024
      %61 = vsyncadd [#allocation6], %s60
      %s62 = sshll.u32 [#allocation7], 4
      %s63 = int_to_ptr.vmem [resolvable:$true] %s62
      %68 = dma.hbm_to_vmem [thread:$0]  %s9, 1024, %s63, [#allocation6], 64, 64, 4
    $region41: #{tpu_custom_call.1} parent=1 // pred_fallthru
      _
    // Predicated region
    $region42: #{tpu_custom_call.1} parent=1 // pred_check
      _
    $region43: #{tpu_custom_call.1} parent=1 // pred_check_branch
      %70 = sbr.rel (0) target = $region45
    $region44: #{tpu_custom_call.1} parent=1 // pred_region
      _
    $region45: #{tpu_custom_call.1} parent=1 // pred_fallthru
      _
    // Predicated region
    $region46: #{tpu_custom_call.1} parent=1 // pred_check
      _
    $region47: #{tpu_custom_call.1} parent=1 // pred_check_branch
      %72 = sbr.rel (0) target = $region49
    $region48: #{tpu_custom_call.1} parent=1 // pred_region
      %73 = dma.done [#allocation3], 128
    $region49: #{tpu_custom_call.1} parent=1 // pred_fallthru
      _
    // Predicated region
    $region50: #{tpu_custom_call.1} parent=1 // pred_check
      _
    $region51: #{tpu_custom_call.1} parent=1 // pred_check_branch
      %75 = sbr.rel (0) target = $region53
    $region52: #{tpu_custom_call.1} parent=1 // pred_region
      %76 = dma.done [#allocation6], 1024
    $region53: #{tpu_custom_call.1} parent=1 // pred_fallthru
      _
    // Predicated region
    $region54: #{tpu_custom_call.1} parent=1 // pred_check
      _
    $region55: #{tpu_custom_call.1} parent=1 // pred_check_branch
      %78 = sbr.rel (0) target = $region57
    $region56: #{tpu_custom_call.1} parent=1 // pred_region
      %79 = dma.done [#allocation6], 1024
    $region57: #{tpu_custom_call.1} parent=1 // pred_fallthru
      _
    %v81 = vld [vmem:[%s1] sm:$0xff]
    %v82 = vlaneseq
    %v83 = vand.u32 %v82, 127
    %84 = vset.pattern.permute.xlu0 0
    %85 = vperm.xlu0 %84, %v81
    %v86 = vpop.permute.xlu0 %85
    %vm87 = vcmp.eq.s32.totalorder %v83, %v86
    %v88 = vsel %vm87, 1, 0
    %v89 = vcvt.s32.f32 %v88
    %v90 = vpack.c.bf16 %v89, %v89
    %v91 = vld [vmem:[%s0] sm:$0xf]
    %v92 = vld [vmem:[%s3] sm:$0xf]
    %v93 = vld [vmem:[%s3 + $0x4] sm:$0xf]
    %v94 = vld [vmem:[%s3 + $0x8] sm:$0xf]
    %v95 = vld [vmem:[%s3 + $0xc] sm:$0xf]
    %v96 = vld [vmem:[#allocation2] sm:$0xf]
    %v97 = vld [vmem:[#allocation2 + $0x4] sm:$0x1]
    %v100 = vunpack.c.l.b16 %v96
    %v101 = vunpack.c.l.b16 %v97
    %v102 = vpack.c.b16 %v101, %v100
    %vm103 = vcmask 80896
    %v105 = vsel %vm103, %v90, 0
    %vm107 = vcmask 1044480
    %v109 = vsel %vm107, %v102, 0
    %111 = vmatprep.subr.bf16.mxu0 0
    %112 = vmatpush1.bf16.msra.mxu0 0
    %113 = vmatprep.subr.bf16.mxu0 0
    %114 = vmatpush1.bf16.msra.mxu0 0
    %115 = vmatprep.subr.bf16.mxu0 0
    %116 = vmatpush1.bf16.msra.mxu0 0
    %117 = vmatprep.subr.bf16.mxu0 0
    %118 = vmatpush1.bf16.msra.mxu0 0
    %119 = vmatprep.subr.bf16.mxu0 0
    %120 = vmatpush1.bf16.msra.mxu0 0
    %121 = vmatprep.subr.bf16.mxu0 0
    %122 = vmatpush1.bf16.msra.mxu0 0
    %123 = vmatprep.subr.bf16.mxu0 0
    %124 = vmatpush1.bf16.msra.mxu0 0
    %125 = vmatprep.subr.bf16.mxu0 0
    %126 = vmatpush1.bf16.msra.mxu0 %v109
    %127 = vmatprep.subr.bf16.mxu0 0
    %128 = vmatpush2.bf16.msra.mxu0 0
    %129 = vmatprep.subr.bf16.mxu0 0
    %130 = vmatpush2.bf16.msra.mxu0 0
    %131 = vmatprep.subr.bf16.mxu0 0
    %132 = vmatpush2.bf16.msra.mxu0 0
    %133 = vmatprep.subr.bf16.mxu0 0
    %134 = vmatpush2.bf16.msra.mxu0 0
    %135 = vmatprep.subr.bf16.mxu0 0
    %136 = vmatpush2.bf16.msra.mxu0 0
    %137 = vmatprep.subr.bf16.mxu0 0
    %138 = vmatpush2.bf16.msra.mxu0 0
    %139 = vmatprep.subr.bf16.mxu0 0
    %140 = vmatpush2.bf16.msra.mxu0 0
    %141 = vmatprep.subr.bf16.mxu0 0
    %142 = vmatpush2.bf16.msra.mxu0 0
    %143 = vmatprep.mubr.bf16.mxu0 0
    %144 = vmatmul.mubr.bf16.gmra.mxu0 %v105
    %v145 = vpop.f32.mrf.mxu0
    %v146 = vadd.f32 0.0, %v145
    %v147 = vpop.f32.mrf.mxu0
    %v148 = vpop.f32.mrf.mxu0
    %v149 = vpop.f32.mrf.mxu0
    %150 = vdwg.mxu0
    %v155 = vunpack.c.l.b16 %v92
    %v156 = vunpack.c.l.b16 %v93
    %v157 = vunpack.c.l.b16 %v94
    %v158 = vunpack.c.l.b16 %v95
    %v159 = vpack.c.b16 %v156, %v155
    %v160 = vpack.c.b16 %v158, %v157
    %vm163 = vcmask 261120
    %v165 = vsel %vm163, %v91, 0
    %167 = vmatprep.subr.bf16.mxu0 0
    %168 = vmatpush1.bf16.msra.mxu0 0
    %169 = vmatprep.subr.bf16.mxu0 0
    %170 = vmatpush1.bf16.msra.mxu0 0
    %171 = vmatprep.subr.bf16.mxu0 0
    %172 = vmatpush1.bf16.msra.mxu0 0
    %173 = vmatprep.subr.bf16.mxu0 0
    %174 = vmatpush1.bf16.msra.mxu0 0
    %175 = vmatprep.subr.bf16.mxu0 0
    %176 = vmatpush1.bf16.msra.mxu0 0
    %177 = vmatprep.subr.bf16.mxu0 0
    %178 = vmatpush1.bf16.msra.mxu0 0
    %179 = vmatprep.subr.bf16.mxu0 0
    %180 = vmatpush1.bf16.msra.mxu0 %v160
    %181 = vmatprep.subr.bf16.mxu0 0
    %182 = vmatpush1.bf16.msra.mxu0 %v159
    %183 = vmatprep.subr.bf16.mxu0 0
    %184 = vmatpush2.bf16.msra.mxu0 0
    %185 = vmatprep.subr.bf16.mxu0 0
    %186 = vmatpush2.bf16.msra.mxu0 0
    %187 = vmatprep.subr.bf16.mxu0 0
    %188 = vmatpush2.bf16.msra.mxu0 0
    %189 = vmatprep.subr.bf16.mxu0 0
    %190 = vmatpush2.bf16.msra.mxu0 0
    %191 = vmatprep.subr.bf16.mxu0 0
    %192 = vmatpush2.bf16.msra.mxu0 0
    %193 = vmatprep.subr.bf16.mxu0 0
    %194 = vmatpush2.bf16.msra.mxu0 0
    %195 = vmatprep.subr.bf16.mxu0 0
    %196 = vmatpush2.bf16.msra.mxu0 0
    %197 = vmatprep.subr.bf16.mxu0 0
    %198 = vmatpush2.bf16.msra.mxu0 0
    %199 = vmatprep.mubr.bf16.mxu0 0
    %200 = vmatmul.mubr.bf16.gmra.mxu0 %v165
    %v201 = vpop.f32.mrf.mxu0
    %v202 = vadd.f32 %v146, %v201
    %v203 = vpop.f32.mrf.mxu0
    %v204 = vpop.f32.mrf.mxu0
    %v205 = vpop.f32.mrf.mxu0
    %206 = vdwg.mxu0
    %v207 = vld [vmem:[%s2] sm:$0xf]
    %v208 = vld [vmem:[%s5] sm:$0x3]
    %vm209 = vcmask 23552
    %v211 = vsel %vm209, %v207, 0
    %vm213 = vcmask 1040384
    %vm214 = vcmask 1041408
    %v215 = vsel %vm213, 4294967295, 65535
    %v216 = vsel %vm214, %v215, 0
    %v218 = vand.u32 %v208, %v216
    %220 = vmatprep.subr.bf16.mxu0 0
    %221 = vmatpush1.bf16.msra.mxu0 0
    %222 = vmatprep.subr.bf16.mxu0 0
    %223 = vmatpush1.bf16.msra.mxu0 0
    %224 = vmatprep.subr.bf16.mxu0 0
    %225 = vmatpush1.bf16.msra.mxu0 0
    %226 = vmatprep.subr.bf16.mxu0 0
    %227 = vmatpush1.bf16.msra.mxu0 0
    %228 = vmatprep.subr.bf16.mxu0 0
    %229 = vmatpush1.bf16.msra.mxu0 0
    %230 = vmatprep.subr.bf16.mxu0 0
    %231 = vmatpush1.bf16.msra.mxu0 0
    %232 = vmatprep.subr.bf16.mxu0 0
    %233 = vmatpush1.bf16.msra.mxu0 0
    %234 = vmatprep.subr.bf16.mxu0 0
    %235 = vmatpush1.bf16.msra.mxu0 %v218
    %236 = vmatprep.subr.bf16.mxu0 0
    %237 = vmatpush2.bf16.msra.mxu0 0
    %238 = vmatprep.subr.bf16.mxu0 0
    %239 = vmatpush2.bf16.msra.mxu0 0
    %240 = vmatprep.subr.bf16.mxu0 0
    %241 = vmatpush2.bf16.msra.mxu0 0
    %242 = vmatprep.subr.bf16.mxu0 0
    %243 = vmatpush2.bf16.msra.mxu0 0
    %244 = vmatprep.subr.bf16.mxu0 0
    %245 = vmatpush2.bf16.msra.mxu0 0
    %246 = vmatprep.subr.bf16.mxu0 0
    %247 = vmatpush2.bf16.msra.mxu0 0
    %248 = vmatprep.subr.bf16.mxu0 0
    %249 = vmatpush2.bf16.msra.mxu0 0
    %250 = vmatprep.subr.bf16.mxu0 0
    %251 = vmatpush2.bf16.msra.mxu0 0
    %252 = vmatprep.mubr.bf16.mxu0 0
    %253 = vmatmul.mubr.bf16.gmra.mxu0 %v211
    %v254 = vpop.f32.mrf.mxu0
    %v255 = vadd.f32 0.0, %v254
    %v256 = vpop.f32.mrf.mxu0
    %v257 = vpop.f32.mrf.mxu0
    %v258 = vpop.f32.mrf.mxu0
    %259 = vdwg.mxu0
    %v260 = vadd.f32 %v202, %v255
    %v261 = vld [vmem:[%s6] sm:$0x1]
    %v263 = vlaneseq
    %v264 = vshrl.u32 %v263, 7
    %v265 = vsub.s32 0, %v264
    %v266 = vrot.slane %v261, %v265
    %v268 = vadd.f32 %v260, %v266
    %v269 = vmax.f32 %v268, 0.0
    %v270 = vpack.c.bf16 %v269, %v269
    %v271 = vld [vmem:[#allocation5] sm:$0xf]
    %v272 = vld [vmem:[#allocation5 + $0x4] sm:$0xf]
    %v273 = vld [vmem:[#allocation5 + $0x8] sm:$0xf]
    %v274 = vld [vmem:[#allocation5 + $0xc] sm:$0xf]
    %v275 = vld [vmem:[#allocation5 + $0x10] sm:$0xf]
    %v276 = vld [vmem:[#allocation5 + $0x14] sm:$0xf]
    %v277 = vld [vmem:[#allocation5 + $0x18] sm:$0xf]
    %v278 = vld [vmem:[#allocation5 + $0x1c] sm:$0xf]
    %v279 = vld [vmem:[#allocation5 + $0x20] sm:$0xf]
    %v280 = vld [vmem:[#allocation5 + $0x24] sm:$0xf]
    %v281 = vld [vmem:[#allocation5 + $0x28] sm:$0xf]
    %v282 = vld [vmem:[#allocation5 + $0x2c] sm:$0xf]
    %v283 = vld [vmem:[#allocation5 + $0x30] sm:$0xf]
    %v284 = vld [vmem:[#allocation5 + $0x34] sm:$0xf]
    %v285 = vld [vmem:[#allocation5 + $0x38] sm:$0xf]
    %v286 = vld [vmem:[#allocation5 + $0x3c] sm:$0xf]
    %v287 = vld [vmem:[%s8] sm:$0x1]
    %v289 = vlaneseq
    %v290 = vshrl.u32 %v289, 7
    %v291 = vsub.s32 0, %v290
    %v292 = vrot.slane %v287, %v291
    %v310 = vunpack.c.l.b16 %v271
    %v311 = vunpack.c.l.b16 %v272
    %v312 = vunpack.c.l.b16 %v273
    %v313 = vunpack.c.l.b16 %v274
    %v314 = vunpack.c.l.b16 %v275
    %v315 = vunpack.c.l.b16 %v276
    %v316 = vunpack.c.l.b16 %v277
    %v317 = vunpack.c.l.b16 %v278
    %v318 = vunpack.c.l.b16 %v279
    %v319 = vunpack.c.l.b16 %v280
    %v320 = vunpack.c.l.b16 %v281
    %v321 = vunpack.c.l.b16 %v282
    %v322 = vunpack.c.l.b16 %v283
    %v323 = vunpack.c.l.b16 %v284
    %v324 = vunpack.c.l.b16 %v285
    %v325 = vunpack.c.l.b16 %v286
    %v326 = vpack.c.b16 %v311, %v310
    %v327 = vpack.c.b16 %v313, %v312
    %v328 = vpack.c.b16 %v315, %v314
    %v329 = vpack.c.b16 %v317, %v316
    %v330 = vpack.c.b16 %v319, %v318
    %v331 = vpack.c.b16 %v321, %v320
    %v332 = vpack.c.b16 %v323, %v322
    %v333 = vpack.c.b16 %v325, %v324
    %342 = vmatprep.subr.bf16.mxu0 0
    %343 = vmatpush1.bf16.msra.mxu0 %v333
    %344 = vmatprep.subr.bf16.mxu0 0
    %345 = vmatpush1.bf16.msra.mxu0 %v332
    %346 = vmatprep.subr.bf16.mxu0 0
    %347 = vmatpush1.bf16.msra.mxu0 %v331
    %348 = vmatprep.subr.bf16.mxu0 0
    %349 = vmatpush1.bf16.msra.mxu0 %v330
    %350 = vmatprep.subr.bf16.mxu0 0
    %351 = vmatpush1.bf16.msra.mxu0 %v329
    %352 = vmatprep.subr.bf16.mxu0 0
    %353 = vmatpush1.bf16.msra.mxu0 %v328
    %354 = vmatprep.subr.bf16.mxu0 0
    %355 = vmatpush1.bf16.msra.mxu0 %v327
    %356 = vmatprep.subr.bf16.mxu0 0
    %357 = vmatpush1.bf16.msra.mxu0 %v326
    %358 = vmatprep.subr.bf16.mxu0 0
    %359 = vmatpush2.bf16.msra.mxu0 0
    %360 = vmatprep.subr.bf16.mxu0 0
    %361 = vmatpush2.bf16.msra.mxu0 0
    %362 = vmatprep.subr.bf16.mxu0 0
    %363 = vmatpush2.bf16.msra.mxu0 0
    %364 = vmatprep.subr.bf16.mxu0 0
    %365 = vmatpush2.bf16.msra.mxu0 0
    %366 = vmatprep.subr.bf16.mxu0 0
    %367 = vmatpush2.bf16.msra.mxu0 0
    %368 = vmatprep.subr.bf16.mxu0 0
    %369 = vmatpush2.bf16.msra.mxu0 0
    %370 = vmatprep.subr.bf16.mxu0 0
    %371 = vmatpush2.bf16.msra.mxu0 0
    %372 = vmatprep.subr.bf16.mxu0 0
    %373 = vmatpush2.bf16.msra.mxu0 0
    %374 = vmatprep.mubr.bf16.mxu0 0
    %375 = vmatmul.mubr.bf16.gmra.mxu0 %v270
    %v376 = vpop.f32.mrf.mxu0
    %v377 = vadd.f32 %v292, %v376
    %v378 = vpop.f32.mrf.mxu0
    %v379 = vpop.f32.mrf.mxu0
    %v380 = vpop.f32.mrf.mxu0
    %381 = vdwg.mxu0
    %v382 = vmax.f32 %v377, 0.0
    %v383 = vpack.c.bf16 %v382, %v382
    %v384 = vld [vmem:[#allocation7] sm:$0xf]
    %v385 = vld [vmem:[#allocation7 + $0x4] sm:$0xf]
    %v386 = vld [vmem:[#allocation7 + $0x8] sm:$0xf]
    %v387 = vld [vmem:[#allocation7 + $0xc] sm:$0xf]
    %v388 = vld [vmem:[#allocation7 + $0x10] sm:$0xf]
    %v389 = vld [vmem:[#allocation7 + $0x14] sm:$0xf]
    %v390 = vld [vmem:[#allocation7 + $0x18] sm:$0xf]
    %v391 = vld [vmem:[#allocation7 + $0x1c] sm:$0xf]
    %v392 = vld [vmem:[#allocation7 + $0x20] sm:$0xf]
    %v393 = vld [vmem:[#allocation7 + $0x24] sm:$0xf]
    %v394 = vld [vmem:[#allocation7 + $0x28] sm:$0xf]
    %v395 = vld [vmem:[#allocation7 + $0x2c] sm:$0xf]
    %v396 = vld [vmem:[#allocation7 + $0x30] sm:$0xf]
    %v397 = vld [vmem:[#allocation7 + $0x34] sm:$0xf]
    %v398 = vld [vmem:[#allocation7 + $0x38] sm:$0xf]
    %v399 = vld [vmem:[#allocation7 + $0x3c] sm:$0xf]
    %v400 = vld [vmem:[%s10] sm:$0x1]
    %v402 = vlaneseq
    %v403 = vshrl.u32 %v402, 7
    %v404 = vsub.s32 0, %v403
    %v405 = vrot.slane %v400, %v404
    %v423 = vunpack.c.l.b16 %v384
    %v424 = vunpack.c.l.b16 %v385
    %v425 = vunpack.c.l.b16 %v386
    %v426 = vunpack.c.l.b16 %v387
    %v427 = vunpack.c.l.b16 %v388
    %v428 = vunpack.c.l.b16 %v389
    %v429 = vunpack.c.l.b16 %v390
    %v430 = vunpack.c.l.b16 %v391
    %v431 = vunpack.c.l.b16 %v392
    %v432 = vunpack.c.l.b16 %v393
    %v433 = vunpack.c.l.b16 %v394
    %v434 = vunpack.c.l.b16 %v395
    %v435 = vunpack.c.l.b16 %v396
    %v436 = vunpack.c.l.b16 %v397
    %v437 = vunpack.c.l.b16 %v398
    %v438 = vunpack.c.l.b16 %v399
    %v439 = vpack.c.b16 %v424, %v423
    %v440 = vpack.c.b16 %v426, %v425
    %v441 = vpack.c.b16 %v428, %v427
    %v442 = vpack.c.b16 %v430, %v429
    %v443 = vpack.c.b16 %v432, %v431
    %v444 = vpack.c.b16 %v434, %v433
    %v445 = vpack.c.b16 %v436, %v435
    %v446 = vpack.c.b16 %v438, %v437
    %455 = vmatprep.subr.bf16.mxu0 0
    %456 = vmatpush1.bf16.msra.mxu0 %v446
    %457 = vmatprep.subr.bf16.mxu0 0
    %458 = vmatpush1.bf16.msra.mxu0 %v445
    %459 = vmatprep.subr.bf16.mxu0 0
    %460 = vmatpush1.bf16.msra.mxu0 %v444
    %461 = vmatprep.subr.bf16.mxu0 0
    %462 = vmatpush1.bf16.msra.mxu0 %v443
    %463 = vmatprep.subr.bf16.mxu0 0
    %464 = vmatpush1.bf16.msra.mxu0 %v442
    %465 = vmatprep.subr.bf16.mxu0 0
    %466 = vmatpush1.bf16.msra.mxu0 %v441
    %467 = vmatprep.subr.bf16.mxu0 0
    %468 = vmatpush1.bf16.msra.mxu0 %v440
    %469 = vmatprep.subr.bf16.mxu0 0
    %470 = vmatpush1.bf16.msra.mxu0 %v439
    %471 = vmatprep.subr.bf16.mxu0 0
    %472 = vmatpush2.bf16.msra.mxu0 0
    %473 = vmatprep.subr.bf16.mxu0 0
    %474 = vmatpush2.bf16.msra.mxu0 0
    %475 = vmatprep.subr.bf16.mxu0 0
    %476 = vmatpush2.bf16.msra.mxu0 0
    %477 = vmatprep.subr.bf16.mxu0 0
    %478 = vmatpush2.bf16.msra.mxu0 0
    %479 = vmatprep.subr.bf16.mxu0 0
    %480 = vmatpush2.bf16.msra.mxu0 0
    %481 = vmatprep.subr.bf16.mxu0 0
    %482 = vmatpush2.bf16.msra.mxu0 0
    %483 = vmatprep.subr.bf16.mxu0 0
    %484 = vmatpush2.bf16.msra.mxu0 0
    %485 = vmatprep.subr.bf16.mxu0 0
    %486 = vmatpush2.bf16.msra.mxu0 0
    %487 = vmatprep.mubr.bf16.mxu0 0
    %488 = vmatmul.mubr.bf16.gmra.mxu0 %v383
    %v489 = vpop.f32.mrf.mxu0
    %v490 = vadd.f32 %v405, %v489
    %v491 = vpop.f32.mrf.mxu0
    %v492 = vpop.f32.mrf.mxu0
    %v493 = vpop.f32.mrf.mxu0
    %494 = vdwg.mxu0
    %495 = vst [vmem:[#allocation8] sm:$0xff] %v490
    // Predicated region
    $region58: #{tpu_custom_call.1} parent=1 // pred_check
      _
    $region59: #{tpu_custom_call.1} parent=1 // pred_check_branch
      %497 = sbr.rel (0) target = $region61
    $region60: #{tpu_custom_call.1} parent=1 // pred_region
      %s499 = ssub.s32 128, 128
      %500 = vsyncadd [#allocation4], %s499
      %s502 = sshll.u32 [#allocation8], 4
      %s503 = int_to_ptr.vmem [resolvable:$true] %s502
      %505 = dma.vmem_to_hbm [thread:$0]  %s503, 128, %s11, [#allocation4]
    $region61: #{tpu_custom_call.1} parent=1 // pred_fallthru
      _
    // Predicated region
    $region62: #{tpu_custom_call.1} parent=1 // pred_check
      _
    $region63: #{tpu_custom_call.1} parent=1 // pred_check_branch
      %507 = sbr.rel (0) target = $region65
    $region64: #{tpu_custom_call.1} parent=1 // pred_region
      %508 = dma.done [#allocation4], 128
    $region65: #{tpu_custom_call.1} parent=1 // pred_fallthru
      _
    %509 = vsyncpa [#allocation3], 1
    %510 = vsyncpa [#allocation6], 1
    %511 = vsyncpa [#allocation4], 1

</llo_original>
